<compile_context>
chip_gen: v7x
topology: tpu7x:2x2x1
jax: 0.10.0
libtpu: 0.0.40
codegen_flags: <defaults>
</compile_context>

<pallas_src>
import math

import jax
import jax.numpy as jnp
from jax.experimental import pallas as pl
from jax.experimental.pallas import tpu as pltpu


def _round_up(x, m):
    return ((x + m - 1) // m) * m


# ----------------------------- Pallas kernel ------------------------------ #
def _proj_kernel(x_ref, w_ref, b_ref, o_ref):
    # x_ref: (tm, K) bf16, w_ref: (K, tn) bf16, b_ref: (1, tn) f32,
    # o_ref: (tm, tn) f32.  bf16 MXU matmul with f32 accumulation + f32 bias.
    acc = jnp.dot(x_ref[...], w_ref[...], preferred_element_type=jnp.float32)
    o_ref[...] = (acc + b_ref[...]).astype(o_ref.dtype)


def linear_pallas(x2d, w_kn, b_1n, *, tm, tn, out_dtype=jnp.float32):
    """y = x2d @ w_kn + b_1n, tiled as (tm, K) x (K, tn) blocks."""
    M, K = x2d.shape
    K2, N = w_kn.shape
    assert K == K2 and M % tm == 0 and N % tn == 0

    flops = 2 * M * K * N
    bytes_accessed = (M * K * x2d.dtype.itemsize
                      + K * N * w_kn.dtype.itemsize
                      + N * b_1n.dtype.itemsize
                      + M * N * jnp.dtype(out_dtype).itemsize)

    return pl.pallas_call(
        _proj_kernel,
        out_shape=jax.ShapeDtypeStruct((M, N), out_dtype),
        grid_spec=pltpu.PrefetchScalarGridSpec(
            num_scalar_prefetch=0,
            grid=(M // tm, N // tn),
            in_specs=[
                pl.BlockSpec((tm, K), lambda i, j: (i, 0)),   # activations
                pl.BlockSpec((K, tn), lambda i, j: (0, j)),   # weight tile
                pl.BlockSpec((1, tn), lambda i, j: (0, j)),   # bias tile
            ],
            out_specs=pl.BlockSpec((tm, tn), lambda i, j: (i, j)),
        ),
        compiler_params=pltpu.CompilerParams(
            dimension_semantics=("parallel", "parallel"),
            vmem_limit_bytes=64 * 1024 * 1024),
        cost_estimate=pl.CostEstimate(flops=flops, transcendentals=0,
                                      bytes_accessed=bytes_accessed),
    )(x2d, w_kn, b_1n)


def _choose_tm(M):
    # Largest MXU-friendly row tile that still leaves >=2 grid steps (so the
    # "parallel" axis can shard across v7x's two TensorCores); otherwise one
    # 16-aligned block covering (padded) M.
    for cand in (512, 256, 128, 64, 32, 16):
        if M >= 2 * cand:
            return cand
    return max(16, _round_up(M, 16))


def _choose_tn(n_pad):
    # Keep the full lane-dense weight width resident when small (DMA'd once,
    # constant index_map); tile N only when a full-width bf16 weight block
    # would pressure VMEM (v7x: 64 MiB physical / 32 MiB default scoped).
    if n_pad <= 2048:
        return n_pad
    for tn in range(2048, 127, -128):
        if n_pad % tn == 0:
            return tn
    return 128


# ------------------------------- JAX glue ---------------------------------- #
def _merged_features_khkwc(inp, ms):
    """[bs, nW, nP, C] -> [bs, L, ms*ms*C] with features in (kh, kw, c) order.

    Equivalent to window2image + F.unfold(ms, ms).transpose(-1,-2) up to a
    permutation of the feature axis (compensated by permuting weight rows at
    init).  Keeps C in the last (lane) dim throughout; a single transpose when
    ws % ms == 0 (typical Swin), two lane-friendly transposes otherwise.
    """
    bs, num_window, num_patch_in_window, C = inp.shape
    nw = int(round(math.sqrt(num_window)))
    ws = int(round(math.sqrt(num_patch_in_window)))
    assert nw * nw == num_window, "num_window must be a perfect square"
    assert ws * ws == num_patch_in_window, ("num_patch_in_window must be a "
                                            "perfect square")
    H = W = nw * ws
    assert H % ms == 0, "image side must be divisible by merge_size"
    Ho, Wo = H // ms, W // ms
    if ws % ms == 0:
        wsm = ws // ms
        x = inp.reshape(bs, nw, nw, wsm, ms, wsm, ms, C)
        x = jnp.transpose(x, (0, 1, 3, 2, 5, 4, 6, 7))
        return x.reshape(bs, Ho * Wo, ms * ms * C)
    # General fallback: NHWC image, then NHWC unfold (C stays in lanes).
    x = inp.reshape(bs, nw, nw, ws, ws, C)
    x = jnp.transpose(x, (0, 1, 3, 2, 4, 5)).reshape(bs, H, W, C)
    x = x.reshape(bs, Ho, ms, Wo, ms, C)
    x = jnp.transpose(x, (0, 1, 3, 2, 4, 5))
    return x.reshape(bs, Ho * Wo, ms * ms * C)


def _unfold_torch_order(inp, ms):
    """Pure-JAX replica of window2image + F.unfold (feature order c, kh, kw)."""
    bs, num_window, num_patch_in_window, C = inp.shape
    nw = int(round(math.sqrt(num_window)))
    ws = int(round(math.sqrt(num_patch_in_window)))
    H = W = nw * ws
    img = inp.reshape(bs, nw, nw, ws, ws, C)
    img = jnp.transpose(img, (0, 1, 3, 2, 4, 5)).reshape(bs, H, W, C)
    img = jnp.transpose(img, (0, 3, 1, 2))                       # NCHW
    Ho, Wo = H // ms, W // ms
    u = img.reshape(bs, C, Ho, ms, Wo, ms)
    u = jnp.transpose(u, (0, 2, 4, 1, 3, 5))                     # [bs,Ho,Wo,C,ms,ms]
    return u.reshape(bs, Ho * Wo, C * ms * ms)


class PatchMergingPallas:
    def __init__(self, model_dim, merge_size, output_depth_scale=0.5,
                 key=jax.random.PRNGKey(0)):
        self.merge_size = ms = merge_size
        in_dim = model_dim * ms * ms
        out_dim = int(in_dim * output_depth_scale)
        self.out_dim = out_dim

        kw_, kb_ = jax.random.split(key)
        bound = 1.0 / math.sqrt(in_dim)
        # torch.nn.Linear stores weight as [out, in]; keep transposed [in, out]
        # (rows indexed in unfold order c, kh, kw).
        w_kn = jax.random.uniform(kw_, (in_dim, out_dim), jnp.float32,
                                  -bound, bound)
        b_n = jax.random.uniform(kb_, (out_dim,), jnp.float32, -bound, bound)
        self.w_ref_f32 = w_kn          # torch-order f32 copies, kept for the
        self.b_ref_f32 = b_n           # reference check in __main__ only.

        # One-time row permutation (c, kh, kw) -> (kh, kw, c): matches the
        # lane-friendly activation layout, so no NCHW image / unfold transpose
        # of the activation is ever materialized.
        w_perm = w_kn.reshape(model_dim, ms, ms, out_dim)
        w_perm = jnp.transpose(w_perm, (1, 2, 0, 3)).reshape(in_dim, out_dim)

        # Pad columns to a multiple of 128 so the kernel's output stores are
        # lane-dense (no masked vst).  No-op for real Swin dims (out_dim%128==0).
        n_pad = _round_up(out_dim, 128)
        if n_pad != out_dim:
            w_perm = jnp.pad(w_perm, ((0, 0), (0, n_pad - out_dim)))
            b_pad = jnp.pad(b_n, (0, n_pad - out_dim))
        else:
            b_pad = b_n
        self.n_pad = n_pad
        self.w_kn = w_perm.astype(jnp.bfloat16)                  # bf16 MXU input
        self.b_1n = b_pad.reshape(1, n_pad).astype(jnp.float32)  # f32 bias

    def __call__(self, inp):
        # inp: [bs, num_window, num_patch_in_window, patch_depth]
        merged = _merged_features_khkwc(inp, self.merge_size)    # [bs, L, K]
        bs, L, K = merged.shape
        M = bs * L
        x2d = merged.reshape(M, K).astype(jnp.bfloat16)          # fuses w/ transpose

        tm = _choose_tm(M)
        m_pad = _round_up(M, tm)
        if m_pad != M:
            x2d = jnp.pad(x2d, ((0, m_pad - M), (0, 0)))
        tn = _choose_tn(self.n_pad)

        y2d = linear_pallas(x2d, self.w_kn, self.b_1n, tm=tm, tn=tn)
        y2d = y2d[:M, :self.out_dim]
        return y2d.reshape(bs, L, self.out_dim)                  # [bs, L, out_dim]


# --------------------------------- main ------------------------------------ #
if __name__ == "__main__":
    key = jax.random.PRNGKey(0)
    k_x, k_p = jax.random.split(key)

    bs = 2
    model_dim = 8             # patch_depth
    merge_size = 2
    num_window = 16           # 4x4 grid of windows
    num_patch_in_window = 16  # 4x4 patches per window -> image H = W = 16

    x = jax.random.normal(
        k_x, (bs, num_window, num_patch_in_window, model_dim), jnp.float32)

    module = PatchMergingPallas(model_dim, merge_size, 0.5, key=k_p)
    out = jax.block_until_ready(jax.jit(lambda a: module(a))(x))

    expected_L = num_window * num_patch_in_window // (merge_size ** 2)
    expected_D = int(model_dim * merge_size * merge_size * 0.5)
    assert out.shape == (bs, expected_L, expected_D)

    # Reference: exact PyTorch-equivalent path (NCHW window2image + unfold,
    # torch-order weight rows).
    u = _unfold_torch_order(x, merge_size)                       # [bs, L, K]
    K = u.shape[-1]
    u2 = u.reshape(-1, K)
    out2 = out.reshape(-1, expected_D)

    # 1) Tight check: same bf16-rounded inputs, f32 accumulation (MXU vs XLA).
    ref_bf16 = jnp.dot(u2.astype(jnp.bfloat16),
                       module.w_ref_f32.astype(jnp.bfloat16),
                       preferred_element_type=jnp.float32) + module.b_ref_f32
    assert jnp.allclose(out2, ref_bf16, atol=1e-3, rtol=1e-3), \
        float(jnp.max(jnp.abs(out2 - ref_bf16)))

    # 2) Semantic check against the full-f32 reference (bf16 rounding slack).
    ref_f32 = u2 @ module.w_ref_f32 + module.b_ref_f32
    assert jnp.allclose(out2, ref_f32, atol=5e-2, rtol=5e-2), \
        float(jnp.max(jnp.abs(out2 - ref_f32)))

    print("KERNEL_OK")
</pallas_src>

<mosaic_0001>
module attributes {stable_mosaic.version = 11 : i64} {
  func.func @_proj_kernel(%arg0: i32, %arg1: i32, %arg2: memref<64x32xbf16, #tpu.memory_space<vmem>>, %arg3: memref<32x128xbf16, #tpu.memory_space<vmem>>, %arg4: memref<1x128xf32, #tpu.memory_space<vmem>>, %arg5: memref<64x128xf32, #tpu.memory_space<vmem>>) attributes {dimension_semantics = [#tpu.dimension_semantics<parallel>, #tpu.dimension_semantics<parallel>], iteration_bounds = array<i64: 2, 1>, scalar_prefetch = 0 : i64, scratch_operands = 0 : i64, tpu.core_type = #tpu.core_type<tc>, window_params = [{transform_indices = @transform_0, window_bounds = array<i64: 64, 32>}, {transform_indices = @transform_1, window_bounds = array<i64: 32, 128>}, {transform_indices = @transform_2, window_bounds = array<i64: 1, 128>}, {transform_indices = @transform_3, window_bounds = array<i64: 64, 128>}]} {
    %c0 = arith.constant 0 : index
    %c0_0 = arith.constant 0 : index
    %0 = vector.load %arg2[%c0, %c0_0] : memref<64x32xbf16, #tpu.memory_space<vmem>>, vector<64x32xbf16>
    %c0_1 = arith.constant 0 : index
    %c0_2 = arith.constant 0 : index
    %1 = vector.load %arg3[%c0_1, %c0_2] : memref<32x128xbf16, #tpu.memory_space<vmem>>, vector<32x128xbf16>
    %cst = arith.constant dense<0.000000e+00> : vector<64x128xf32>
    %2 = tpu.matmul %0, %1, %cst {dimension_numbers = #tpu.dot_dimension_numbers<[1], [0], [0], [1], [0, 0, 1, 1], [], []>} : vector<64x32xbf16>, vector<32x128xbf16>, vector<64x128xf32> -> vector<64x128xf32>
    %c0_3 = arith.constant 0 : index
    %c0_4 = arith.constant 0 : index
    %3 = vector.load %arg4[%c0_3, %c0_4] : memref<1x128xf32, #tpu.memory_space<vmem>>, vector<1x128xf32>
    %4 = vector.broadcast %3 : vector<1x128xf32> to vector<64x128xf32>
    %5 = arith.addf %2, %4 : vector<64x128xf32>
    %c0_5 = arith.constant 0 : index
    %c0_6 = arith.constant 0 : index
    %6 = vector.load %arg5[%c0_5, %c0_6] : memref<64x128xf32, #tpu.memory_space<vmem>>, vector<64x128xf32>
    tpu.vector_store %arg5[%c0_5, %c0_6], %5 {strides = array<i32>} : memref<64x128xf32, #tpu.memory_space<vmem>>, vector<64x128xf32>,
    return
  }
  func.func @transform_0(%arg0: i32, %arg1: i32) -> (i32, i32) {
    %c0_i32 = arith.constant 0 : i32
    %c0_i32_0 = arith.constant 0 : i32
    return %arg0, %c0_i32 : i32, i32
  }
  func.func @transform_1(%arg0: i32, %arg1: i32) -> (i32, i32) {
    %c0_i32 = arith.constant 0 : i32
    %c0_i32_0 = arith.constant 0 : i32
    return %c0_i32, %arg1 : i32, i32
  }
  func.func @transform_2(%arg0: i32, %arg1: i32) -> (i32, i32) {
    %c0_i32 = arith.constant 0 : i32
    %c0_i32_0 = arith.constant 0 : i32
    return %c0_i32, %arg1 : i32, i32
  }
  func.func @transform_3(%arg0: i32, %arg1: i32) -> (i32, i32) {
    %c0_i32 = arith.constant 0 : i32
    return %arg0, %arg1 : i32, i32
  }
}

</mosaic_0001>

<llo_original>
// kernel: _lambda_.1
$region0: #{_lambda_.1}
  #allocation0 [shape = 'u32[]', space=smem, size = 0x4, offset = 0x4, fixed_abs, tag = 'smem constant byte address 0x4 - core index']
  #allocation1 [shape = 'u32[144,128]{1,0:T(1,128)}', space=vmem, size = 0x12000, scoped, tag = 'internal scratch']
  %s0 = inlined_call_operand.hbm [shape: bf16[128,32], index: 0, kind: input, shape index: {}]
  %s1 = inlined_call_operand.hbm [shape: bf16[32,128], index: 1, kind: input, shape index: {}]
  %s2 = inlined_call_operand.hbm [shape: f32[1,128], index: 2, kind: input, shape index: {}]
  %s3 = inlined_call_operand.hbm [shape: f32[128,128], index: 3, kind: output, shape index: {}]
  %s4 = sld [smem:[#allocation0]]
  $region57: #{_lambda_.1} parent=0
    _
  %s6 = ssub.s32 1, %s4
  %s7 = scalar_select 0, %s6, %s4
  $region1: #{_lambda_.1} parent=0
    #allocation2 [shape = 'u8[32768]{0}', space=vmem, size = 0x8000, scoped, tag = 'input window, operand 0']
    #allocation3 [shape = 's32[2]{0}', space=sflag, size = 0x8, scoped, tag = 'scoped memory for _lambda_.1']
    #allocation4 [shape = 's32[2]{0}', space=sflag, size = 0x8, scoped, tag = 'scoped memory for _lambda_.1']
    #allocation5 [shape = 'u8[8192]{0}', space=vmem, size = 0x2000, scoped, tag = 'input window, operand 1, single buffered']
    #allocation6 [shape = 's32[1]{0}', space=sflag, size = 0x4, scoped, tag = 'scoped memory for _lambda_.1']
    #allocation7 [shape = 'u8[512]{0}', space=vmem, size = 0x400, scoped, tag = 'input window, operand 2, single buffered']
    #allocation8 [shape = 'u8[65536]{0}', space=vmem, size = 0x10000, scoped, tag = 'output window, operand 0']
    %8 = vsyncpa [#allocation3], 0
    %s9 = scalar_lea.sflag [#allocation3], 1
    %10 = vsyncpa %s9, 0
    %11 = vsyncpa [#allocation6], 0
    %12 = vsyncpa [#allocation4], 0
    %s13 = scalar_lea.sflag [#allocation4], 1
    %14 = vsyncpa %s13, 0
    loop: start=0, step=1, limit=4
    $region2: #{_lambda_.1} parent=1 // loop_pre_header
      _
    $region3: #{_lambda_.1} parent=1 // loop_header
      %s16 = sphi 0, %s20
      %p17 = scmp.ge.s32.totalorder %s16, 4
      %s23 = sphi 0, %s35
      %s24 = sphi 0, %s31
      %s25 = sphi 0, %s23
      %s26 = sphi 0, %s24
      %s27 = sphi 0, %s25
      %s28 = sphi 0, %s26
      %s38 = sphi 0, %s40
      %s41 = sphi 0, %s38
      %s42 = sphi 0, %s41
      %s58 = sphi 0, %s42
      %s64 = sphi 0, %s66
      %s67 = sphi 0, %s64
      %s68 = sphi 0, %s67
      %s84 = sphi 0, %s68
      %s90 = sphi 0, %s92
      %s93 = sphi 0, %s90
      %s94 = sphi 0, %s93
      %s110 = sphi 0, %s94
      %s118 = sphi 0, %s120
      %s121 = sphi 0, %s118
      %s122 = sphi 0, %s121
      %s138 = sphi 0, %s122
    $region4: #{_lambda_.1} parent=1 // loop_header_branch
      %19 = sbr.rel (%p17) target = $region8
    $region5: #{_lambda_.1} parent=1 // loop_body
      %s21 = ssub.s32 %s16, 1
      %s22 = ssub.s32 %s16, 2
      %s29 = sadd.s32 1, %s24
      %p30 = scmp.ge.s32.totalorder %s29, 1
      %s31 = scalar_select %p30, 0, %s29
      %s32 = sadd.s32 1, %s23
      %s33 = scalar_select %p30, %s32, %s23
      %p34 = scmp.ge.s32.totalorder %s33, 2
      %s35 = scalar_select %p34, 0, %s33
      %s36 = ssub.s32 %s23, %s35
      %p37 = scmp.eq.s32.totalorder %s36, 0
      %s39 = sadd.s32 %s38, 1
      %s40 = scalar_select %p37, %s38, %s39
      %p43 = pneg %p37
      %p44 = scmp.eq.s32.totalorder %s16, 1
      %p45 = por %p43, %p44
      %p46 = scmp.ne.s32.totalorder %s38, %s41
      %p47 = scmp.eq.s32.totalorder %s16, 0
      %p48 = por %p46, %p47
      %p49 = scmp.ne.s32.totalorder %s38, %s41
      %p50 = scmp.eq.s32.totalorder %s21, 1
      %p51 = por %p49, %p50
      %p52 = scmp.ne.s32.totalorder %s41, %s42
      %p53 = scmp.eq.s32.totalorder %s21, 0
      %p54 = por %p52, %p53
      %p55 = scmp.ne.s32.totalorder %s41, %s42
      %p56 = scmp.eq.s32.totalorder %s22, 1
      %p57 = por %p55, %p56
      %p59 = scmp.ne.s32.totalorder %s42, %s58
      %p60 = scmp.eq.s32.totalorder %s22, 0
      %p61 = por %p59, %p60
      %s62 = ssub.s32 %s24, %s31
      %p63 = scmp.eq.s32.totalorder %s62, 0
      %s65 = sadd.s32 %s64, 1
      %s66 = scalar_select %p63, %s64, %s65
      %p69 = pneg %p63
      %p70 = scmp.eq.s32.totalorder %s16, 1
      %p71 = por %p69, %p70
      %p72 = scmp.ne.s32.totalorder %s64, %s67
      %p73 = scmp.eq.s32.totalorder %s16, 0
      %p74 = por %p72, %p73
      %p75 = scmp.ne.s32.totalorder %s64, %s67
      %p76 = scmp.eq.s32.totalorder %s21, 1
      %p77 = por %p75, %p76
      %p78 = scmp.ne.s32.totalorder %s67, %s68
      %p79 = scmp.eq.s32.totalorder %s21, 0
      %p80 = por %p78, %p79
      %p81 = scmp.ne.s32.totalorder %s67, %s68
      %p82 = scmp.eq.s32.totalorder %s22, 1
      %p83 = por %p81, %p82
      %p85 = scmp.ne.s32.totalorder %s68, %s84
      %p86 = scmp.eq.s32.totalorder %s22, 0
      %p87 = por %p85, %p86
      %s88 = ssub.s32 %s24, %s31
      %p89 = scmp.eq.s32.totalorder %s88, 0
      %s91 = sadd.s32 %s90, 1
      %s92 = scalar_select %p89, %s90, %s91
      %p95 = pneg %p89
      %p96 = scmp.eq.s32.totalorder %s16, 1
      %p97 = por %p95, %p96
      %p98 = scmp.ne.s32.totalorder %s90, %s93
      %p99 = scmp.eq.s32.totalorder %s16, 0
      %p100 = por %p98, %p99
      %p101 = scmp.ne.s32.totalorder %s90, %s93
      %p102 = scmp.eq.s32.totalorder %s21, 1
      %p103 = por %p101, %p102
      %p104 = scmp.ne.s32.totalorder %s93, %s94
      %p105 = scmp.eq.s32.totalorder %s21, 0
      %p106 = por %p104, %p105
      %p107 = scmp.ne.s32.totalorder %s93, %s94
      %p108 = scmp.eq.s32.totalorder %s22, 1
      %p109 = por %p107, %p108
      %p111 = scmp.ne.s32.totalorder %s94, %s110
      %p112 = scmp.eq.s32.totalorder %s22, 0
      %p113 = por %p111, %p112
      %s114 = ssub.s32 %s23, %s35
      %s115 = ssub.s32 %s24, %s31
      %s116 = sor.u32 %s114, %s115
      %p117 = scmp.eq.s32.totalorder %s116, 0
      %s119 = sadd.s32 %s118, 1
      %s120 = scalar_select %p117, %s118, %s119
      %p123 = pneg %p117
      %p124 = scmp.eq.s32.totalorder %s16, 1
      %p125 = por %p123, %p124
      %p126 = scmp.ne.s32.totalorder %s118, %s121
      %p127 = scmp.eq.s32.totalorder %s16, 0
      %p128 = por %p126, %p127
      %p129 = scmp.ne.s32.totalorder %s118, %s121
      %p130 = scmp.eq.s32.totalorder %s21, 1
      %p131 = por %p129, %p130
      %p132 = scmp.ne.s32.totalorder %s121, %s122
      %p133 = scmp.eq.s32.totalorder %s21, 0
      %p134 = por %p132, %p133
      %p135 = scmp.ne.s32.totalorder %s121, %s122
      %p136 = scmp.eq.s32.totalorder %s22, 1
      %p137 = por %p135, %p136
      %p139 = scmp.ne.s32.totalorder %s122, %s138
      %p140 = scmp.eq.s32.totalorder %s22, 0
      %p141 = por %p139, %p140
      %p142 = scmp.le.s32.totalorder 1, %s16
      %p143 = scmp.lt.s32.totalorder %s16, 3
      %p144 = pnand %p142, %p143
      %p145 = pneg %p144
      // Predicated region
      $region9: #{_lambda_.1} parent=5 // pred_check
        _
      $region10: #{_lambda_.1} parent=5 // pred_check_branch
        %147 = sbr.rel (%p144) target = $region12
      $region11: #{_lambda_.1} parent=5 // pred_region
        %s148 = ssub.s32 %s16, 1
        // Predicated region
        $region13: #{_lambda_.1} parent=11 // pred_check
          %p149 = pneg %p80
        $region14: #{_lambda_.1} parent=11 // pred_check_branch
          %151 = sbr.rel (%p149) target = $region16
        $region15: #{_lambda_.1} parent=11 // pred_region
          %s153 = ssub.s32 256, 256
          %154 = vsyncadd [#allocation6], %s153
          %s155 = smul.addr %s26, 64
          %s156 = scalar_lea.hbm %s1, %s155
          %s157 = sshll.u32 [#allocation5], 4
          %s158 = int_to_ptr.vmem [resolvable:$true] %s157
          %163 = dma.hbm_to_vmem [thread:$0]  %s156, 256, %s158, [#allocation6], 64, 64, 4
        $region16: #{_lambda_.1} parent=11 // pred_fallthru
          _
        // Predicated region
        $region17: #{_lambda_.1} parent=11 // pred_check
          %p164 = pneg %p106
        $region18: #{_lambda_.1} parent=11 // pred_check_branch
          %166 = sbr.rel (%p164) target = $region20
        $region19: #{_lambda_.1} parent=11 // pred_region
          %s168 = ssub.s32 16, 16
          %169 = vsyncadd [#allocation6], %s168
          %s170 = smul.addr %s26, 16
          %s171 = scalar_lea.hbm %s2, %s170
          %s173 = sshll.u32 [#allocation7], 4
          %s174 = int_to_ptr.vmem [resolvable:$true] %s173
          %176 = dma.hbm_to_vmem [thread:$0]  %s171, 16, %s174, [#allocation6]
        $region20: #{_lambda_.1} parent=11 // pred_fallthru
          _
      $region12: #{_lambda_.1} parent=5 // pred_fallthru
        _
      %p177 = scmp.lt.s32.totalorder %s16, 2
      // Predicated region
      $region21: #{_lambda_.1} parent=5 // pred_check
        %p178 = pneg %p177
      $region22: #{_lambda_.1} parent=5 // pred_check_branch
        %180 = sbr.rel (%p178) target = $region24
      $region23: #{_lambda_.1} parent=5 // pred_region
        // Predicated region
        $region25: #{_lambda_.1} parent=23 // pred_check
          %p181 = pneg %p48
        $region26: #{_lambda_.1} parent=23 // pred_check_branch
          %183 = sbr.rel (%p181) target = $region28
        $region27: #{_lambda_.1} parent=23 // pred_region
          %s184 = sand.u32 %s38, 1
          %s185 = scalar_lea.sflag [#allocation3], %s184
          %s186 = sand.u32 %s38, 1
          %s187 = smul.addr %s186, 32
          %s188 = scalar_lea.vmem [#allocation2], %s187
          %s189 = smul.u32 8, %s23
          %s191 = ssub.s32 512, 512
          %192 = vsyncadd %s185, %s191
          %s193 = smul.addr %s189, 64
          %s194 = scalar_lea.hbm %s0, %s193
          %s195 = sshll.u32 %s188, 4
          %s196 = int_to_ptr.vmem [resolvable:$true] %s195
          %201 = dma.hbm_to_vmem [thread:$0]  %s194, 512, %s196, %s185, 64, 64, 4
        $region28: #{_lambda_.1} parent=23 // pred_fallthru
          _
      $region24: #{_lambda_.1} parent=5 // pred_fallthru
        _
      %p202 = scmp.le.s32.totalorder 1, %s16
      %p203 = scmp.lt.s32.totalorder %s16, 3
      %p204 = pnand %p202, %p203
      %p205 = pneg %p204
      // Predicated region
      $region29: #{_lambda_.1} parent=5 // pred_check
        _
      $region30: #{_lambda_.1} parent=5 // pred_check_branch
        %207 = sbr.rel (%p204) target = $region32
      $region31: #{_lambda_.1} parent=5 // pred_region
        %s208 = ssub.s32 %s16, 1
        %s209 = sand.u32 %s41, 1
        %s210 = scalar_lea.sflag [#allocation3], %s209
        %s211 = sand.u32 %s41, 1
        %s212 = smul.addr %s211, 32
        %s213 = scalar_lea.vmem [#allocation2], %s212
        // Predicated region
        $region33: #{_lambda_.1} parent=31 // pred_check
          %p214 = pneg %p54
        $region34: #{_lambda_.1} parent=31 // pred_check_branch
          %216 = sbr.rel (%p214) target = $region36
        $region35: #{_lambda_.1} parent=31 // pred_region
          %217 = dma.done %s210, 512
        $region36: #{_lambda_.1} parent=31 // pred_fallthru
          _
        // Predicated region
        $region37: #{_lambda_.1} parent=31 // pred_check
          %p218 = pneg %p80
        $region38: #{_lambda_.1} parent=31 // pred_check_branch
          %220 = sbr.rel (%p218) target = $region40
        $region39: #{_lambda_.1} parent=31 // pred_region
          %221 = dma.done [#allocation6], 256
        $region40: #{_lambda_.1} parent=31 // pred_fallthru
          _
        // Predicated region
        $region41: #{_lambda_.1} parent=31 // pred_check
          %p222 = pneg %p106
        $region42: #{_lambda_.1} parent=31 // pred_check_branch
          %224 = sbr.rel (%p222) target = $region44
        $region43: #{_lambda_.1} parent=31 // pred_region
          %225 = dma.done [#allocation6], 16
        $region44: #{_lambda_.1} parent=31 // pred_fallthru
          _
        %s226 = sand.u32 %s41, 1
        %s227 = scalar_lea.sflag [#allocation3], %s226
        %s228 = sand.u32 %s41, 1
        %s229 = smul.addr %s228, 32
        %s230 = scalar_lea.vmem [#allocation2], %s229
        %p231 = pneg %p54
        %p232 = pneg %p51
        %p233 = pneg %p80
        %p234 = pneg %p77
        %p235 = pneg %p106
        %p236 = pneg %p103
        %p237 = pneg %p134
        %p238 = pneg %p131
        %s239 = sand.u32 %s121, 1
        %s240 = scalar_lea.sflag [#allocation4], %s239
        %s241 = sand.u32 %s121, 1
        %s242 = smul.addr %s241, 64
        %s243 = scalar_lea.vmem [#allocation8], %s242
        %s244 = smul.u32 8, %s25
        %s245 = smul.u32 8, %s25
        %v247 = vld [vmem:[%s213] sm:$0xf]
        %v248 = vld [vmem:[%s213 + $0x4] sm:$0xf]
        %v249 = vld [vmem:[%s213 + $0x8] sm:$0xf]
        %v250 = vld [vmem:[%s213 + $0xc] sm:$0xf]
        %v251 = vld [vmem:[%s213 + $0x10] sm:$0xf]
        %v252 = vld [vmem:[%s213 + $0x14] sm:$0xf]
        %v253 = vld [vmem:[%s213 + $0x18] sm:$0xf]
        %v254 = vld [vmem:[%s213 + $0x1c] sm:$0xf]
        %v255 = vld [vmem:[#allocation5] sm:$0xf]
        %v256 = vld [vmem:[#allocation5 + $0x4] sm:$0xf]
        %v257 = vld [vmem:[#allocation5 + $0x8] sm:$0xf]
        %v258 = vld [vmem:[#allocation5 + $0xc] sm:$0xf]
        %v259 = vld [vmem:[#allocation7] sm:$0x1]
        %v261 = vlaneseq
        %v262 = vshrl.u32 %v261, 7
        %v263 = vsub.s32 0, %v262
        %v264 = vrot.slane %v259, %v263
        %v274 = vunpack.c.l.b16 %v247
        %v275 = vunpack.c.l.b16 %v248
        %v276 = vunpack.c.l.b16 %v249
        %v277 = vunpack.c.l.b16 %v250
        %v278 = vunpack.c.l.b16 %v251
        %v279 = vunpack.c.l.b16 %v252
        %v280 = vunpack.c.l.b16 %v253
        %v281 = vunpack.c.l.b16 %v254
        %v282 = vpack.c.b16 %v275, %v274
        %v283 = vpack.c.b16 %v277, %v276
        %v284 = vpack.c.b16 %v279, %v278
        %v285 = vpack.c.b16 %v281, %v280
        %v290 = vunpack.c.l.b16 %v255
        %v291 = vunpack.c.l.b16 %v256
        %v292 = vunpack.c.l.b16 %v257
        %v293 = vunpack.c.l.b16 %v258
        %v294 = vpack.c.b16 %v291, %v290
        %v295 = vpack.c.b16 %v293, %v292
        %vm298 = vcmask 261120
        %v300 = vsel %vm298, %v282, 0
        %v303 = vsel %vm298, %v283, 0
        %v306 = vsel %vm298, %v284, 0
        %v309 = vsel %vm298, %v285, 0
        %311 = vmatprep.subr.bf16.mxu0 0
        %312 = vmatpush1.bf16.msra.mxu0 %v294
        %313 = vmatprep.subr.bf16.mxu0 0
        %314 = vmatpush1.bf16.msra.mxu0 %v295
        %315 = vmatprep.subr.bf16.mxu0 0
        %316 = vmatpush1.bf16.msra.mxu0 0
        %317 = vmatprep.subr.bf16.mxu0 0
        %318 = vmatpush1.bf16.msra.mxu0 0
        %319 = vmatprep.subr.bf16.mxu0 0
        %320 = vmatpush1.bf16.msra.mxu0 0
        %321 = vmatprep.subr.bf16.mxu0 0
        %322 = vmatpush1.bf16.msra.mxu0 0
        %323 = vmatprep.subr.bf16.mxu0 0
        %324 = vmatpush1.bf16.msra.mxu0 0
        %325 = vmatprep.subr.bf16.mxu0 0
        %326 = vmatpush1.bf16.msra.mxu0 0
        %327 = vmatprep.subr.bf16.mxu0 0
        %328 = vmatpush1.bf16.msra.mxu0 0
        %329 = vmatprep.subr.bf16.mxu0 0
        %330 = vmatpush1.bf16.msra.mxu0 0
        %331 = vmatprep.subr.bf16.mxu0 0
        %332 = vmatpush1.bf16.msra.mxu0 0
        %333 = vmatprep.subr.bf16.mxu0 0
        %334 = vmatpush1.bf16.msra.mxu0 0
        %335 = vmatprep.subr.bf16.mxu0 0
        %336 = vmatpush1.bf16.msra.mxu0 0
        %337 = vmatprep.subr.bf16.mxu0 0
        %338 = vmatpush1.bf16.msra.mxu0 0
        %339 = vmatprep.subr.bf16.mxu0 0
        %340 = vmatpush1.bf16.msra.mxu0 0
        %341 = vmatprep.subr.bf16.mxu0 0
        %342 = vmatpush1.bf16.msra.mxu0 0
        %343 = vmatprep.mubr.bf16.mxu0 0
        %344 = vmatmul.mubr.bf16.gmra.mrb[0].mxu0 %v300
        %v345 = vpop.f32.mrb[0].mxu0
        %v346 = vadd.f32 %v264, %v345
        %v347 = vpop.f32.mrb[0].mxu0
        %v348 = vpop.f32.mrb[0].mxu0
        %v349 = vadd.f32 %v264, %v348
        %v350 = vpop.f32.mrb[0].mxu0
        %351 = vmatprep.mubr.bf16.mxu0 0
        %352 = vmatmul.mubr.bf16.gmra.mrb[0].mxu0 %v303
        %v353 = vpop.f32.mrb[0].mxu0
        %v354 = vadd.f32 %v264, %v353
        %v355 = vpop.f32.mrb[0].mxu0
        %v356 = vpop.f32.mrb[0].mxu0
        %v357 = vadd.f32 %v264, %v356
        %v358 = vpop.f32.mrb[0].mxu0
        %359 = vmatprep.mubr.bf16.mxu0 0
        %360 = vmatmul.mubr.bf16.gmra.mrb[0].mxu0 %v306
        %v361 = vpop.f32.mrb[0].mxu0
        %v362 = vadd.f32 %v264, %v361
        %v363 = vpop.f32.mrb[0].mxu0
        %v364 = vpop.f32.mrb[0].mxu0
        %v365 = vadd.f32 %v264, %v364
        %v366 = vpop.f32.mrb[0].mxu0
        %367 = vmatprep.mubr.bf16.mxu0 0
        %368 = vmatmul.mubr.bf16.gmra.mrb[0].mxu0 %v309
        %v369 = vpop.f32.mrb[0].mxu0
        %v370 = vadd.f32 %v264, %v369
        %v371 = vpop.f32.mrb[0].mxu0
        %v372 = vpop.f32.mrb[0].mxu0
        %v373 = vadd.f32 %v264, %v372
        %v374 = vpop.f32.mrb[0].mxu0
        %375 = vdwg.mxu0
        %376 = vst [vmem:[%s243] sm:$0xff] %v346
        %377 = vst [vmem:[%s243 + $0x8] sm:$0xff] %v349
        %378 = vst [vmem:[%s243 + $0x10] sm:$0xff] %v354
        %379 = vst [vmem:[%s243 + $0x18] sm:$0xff] %v357
        %380 = vst [vmem:[%s243 + $0x20] sm:$0xff] %v362
        %381 = vst [vmem:[%s243 + $0x28] sm:$0xff] %v365
        %382 = vst [vmem:[%s243 + $0x30] sm:$0xff] %v370
        %383 = vst [vmem:[%s243 + $0x38] sm:$0xff] %v373
        %s384 = sand.u32 %s121, 1
        %s385 = scalar_lea.sflag [#allocation4], %s384
        %s386 = sand.u32 %s121, 1
        %s387 = smul.addr %s386, 64
        %s388 = scalar_lea.vmem [#allocation8], %s387
        // Predicated region
        $region45: #{_lambda_.1} parent=31 // pred_check
          %p389 = pneg %p131
        $region46: #{_lambda_.1} parent=31 // pred_check_branch
          %391 = sbr.rel (%p389) target = $region48
        $region47: #{_lambda_.1} parent=31 // pred_region
          %s392 = smul.u32 8, %s25
          %s394 = ssub.s32 1024, 1024
          %395 = vsyncadd %s385, %s394
          %s396 = sadd.s32 %s26, %s392
          %s397 = smul.addr %s396, 128
          %s398 = scalar_lea.hbm %s3, %s397
          %s399 = sshll.u32 %s388, 4
          %s400 = int_to_ptr.vmem [resolvable:$true] %s399
          %405 = dma.vmem_to_hbm [thread:$0]  %s400, 1024, %s398, %s385, 128, 128, 8
        $region48: #{_lambda_.1} parent=31 // pred_fallthru
          _
      $region32: #{_lambda_.1} parent=5 // pred_fallthru
        _
      %p406 = scmp.le.s32.totalorder 2, %s16
      // Predicated region
      $region49: #{_lambda_.1} parent=5 // pred_check
        %p407 = pneg %p406
      $region50: #{_lambda_.1} parent=5 // pred_check_branch
        %409 = sbr.rel (%p407) target = $region52
      $region51: #{_lambda_.1} parent=5 // pred_region
        %s410 = ssub.s32 %s16, 2
        // Predicated region
        $region53: #{_lambda_.1} parent=51 // pred_check
          %p411 = pneg %p137
        $region54: #{_lambda_.1} parent=51 // pred_check_branch
          %413 = sbr.rel (%p411) target = $region56
        $region55: #{_lambda_.1} parent=51 // pred_region
          %s414 = sand.u32 %s122, 1
          %s415 = scalar_lea.sflag [#allocation4], %s414
          %s416 = sand.u32 %s122, 1
          %s417 = smul.addr %s416, 64
          %s418 = scalar_lea.vmem [#allocation8], %s417
          %419 = dma.done %s415, 1024
        $region56: #{_lambda_.1} parent=51 // pred_fallthru
          _
      $region52: #{_lambda_.1} parent=5 // pred_fallthru
        _
    $region6: #{_lambda_.1} parent=1 // loop_footer
      %s20 = sadd.s32 1, %s16
    $region7: #{_lambda_.1} parent=1 // loop_footer_branch
      %15 = sbr.rel target = $region3
    $region8: #{_lambda_.1} parent=1 // loop_exit
      _
    %420 = vsyncpa [#allocation3], 1
    %s421 = scalar_lea.sflag [#allocation3], 1
    %422 = vsyncpa %s421, 1
    %423 = vsyncpa [#allocation6], 1
    %424 = vsyncpa [#allocation4], 1
    %s425 = scalar_lea.sflag [#allocation4], 1
    %426 = vsyncpa %s425, 1

</llo_original>
